<compile_context>
chip_gen: v5e
topology: v5e:2x2
jax: 0.10.0
libtpu: 0.0.40
codegen_flags: <defaults>
</compile_context>

<pallas_src>
import functools

import jax
import jax.numpy as jnp
from jax import lax
from jax.experimental import pallas as pl
from jax.experimental.pallas import tpu as pltpu

KH = KW = 3      # 3x3 conv, stride 1, pad 1
PAD = 128        # lane halo on each side of the flattened spatial axis (aligned to a lane tile)


def _resnet_block_kernel(H, W, x_ref, w_ref, shift_ref, o_ref, xpad_scr, patch_scr):
    # x_ref     : (NC, HW)            one (batch, channel) plane per sublane row, spatial on lanes
    # w_ref     : (NC, 9*NC)          BN-folded conv weights, block-diagonal over the batch,
    #                                 column blocks ordered by tap t = dh*3 + dw
    # shift_ref : (NC, 1)             folded conv-bias + BN shift per (batch, channel) row
    # o_ref     : (NC, HW)            output = x + relu(conv_bn(x))
    # xpad_scr  : (NC, HW + 2*PAD)    zero-halo'd copy of x along the lane axis
    # patch_scr : (9*NC, HW)          im2col slab, written in aligned 8-row x full-lane blocks
    NC, HW = x_ref.shape
    x = x_ref[...].astype(jnp.float32)

    # Zero only the halo (the interior is fully overwritten); all three stores are lane-aligned.
    xpad_scr[:, :PAD] = jnp.zeros((NC, PAD), jnp.float32)
    xpad_scr[:, PAD + HW:] = jnp.zeros((NC, PAD), jnp.float32)
    xpad_scr[:, PAD:PAD + HW] = x

    # Per-lane column index (identical for every (n, c) row).  Out-of-image rows (h +/- 1) are
    # handled by the zero halo; only the left/right image edges need an explicit mask because a
    # +/-1 lane shift wraps row ends into neighbouring rows.
    lane = lax.broadcasted_iota(jnp.int32, (NC, HW), 1)
    wq = lane % W
    not_left_edge = wq > 0          # valid source for taps with dw-1 == -1
    not_right_edge = wq < W - 1     # valid source for taps with dw-1 == +1

    # im2col: tap (dh, dw) needs x[h+dh-1, w+dw-1], i.e. the flattened plane shifted by
    # s = (dh-1)*W + (dw-1).  Each tap is one lane-offset window load + (optional) mask + one
    # aligned 8-row block store into the lane-dense patch slab.
    for dh in range(KH):
        for dw in range(KW):
            t = dh * KW + dw
            start = PAD + (dh - 1) * W + (dw - 1)
            win = xpad_scr[:, start:start + HW]
            if dw == 0:
                win = jnp.where(not_left_edge, win, 0.0)
            elif dw == 2:
                win = jnp.where(not_right_edge, win, 0.0)
            patch_scr[t * NC:(t + 1) * NC, :] = win

    # Single lane-dense MXU matmul: (NC, 9*NC) @ (9*NC, HW) -> (NC, HW).
    y = jnp.dot(w_ref[...], patch_scr[...], preferred_element_type=jnp.float32)

    # Fused epilogue: folded (conv bias + BN) shift, ReLU, residual.  Dropout(0.5) in eval == id.
    y = jnp.maximum(y + shift_ref[...], 0.0)
    o_ref[...] = (x + y).astype(o_ref.dtype)


def prepare_resnet_block_params(w_oihw, b, gamma, beta, run_mean, run_var, batch, eps=1e-5):
    """Fold eval-mode BatchNorm into the conv and pack weights for the kernel.

    Run once per (weights, batch size) — weights are static at inference time, so none of this
    sits on the per-forward path.
    """
    C = w_oihw.shape[0]
    scale = gamma / jnp.sqrt(run_var + eps)                       # (C,)
    w_fold = w_oihw * scale[:, None, None, None]                  # (Cout, Cin, 3, 3)
    shift = scale * (b - run_mean) + beta                         # (C,)

    # (t, co, ci) with t = dh*3 + dw, matching the kernel's patch-row ordering.
    w_taps = jnp.transpose(w_fold, (2, 3, 0, 1)).reshape(KH * KW, C, C)
    # Block-diagonal over the batch so both images ride the sublane axis of one matmul:
    #   W_big[n*C + co, t*N*C + n'*C + ci] = (n == n') * w_fold[co, ci, dh, dw]
    eye = jnp.eye(batch, dtype=jnp.float32)
    w_big = jnp.einsum("nm,tij->nitmj", eye, w_taps.astype(jnp.float32))
    w_big = w_big.reshape(batch * C, KH * KW * batch * C)
    shift_col = jnp.tile(shift, (batch,)).reshape(batch * C, 1).astype(jnp.float32)
    return w_big, shift_col


def resnet_block_pallas(x_nchw, w_big, shift_col):
    """Eval-mode ResnetBlock forward.  Takes / returns PyTorch-native NCHW."""
    N, C, H, W = x_nchw.shape
    NC, HW = N * C, H * W
    x2 = x_nchw.reshape(NC, HW)        # free, contiguous reshape from NCHW

    kernel = functools.partial(_resnet_block_kernel, H, W)
    out = pl.pallas_call(
        kernel,
        out_shape=jax.ShapeDtypeStruct((NC, HW), x_nchw.dtype),
        in_specs=[
            pl.BlockSpec((NC, HW), lambda: (0, 0)),
            pl.BlockSpec((NC, KH * KW * NC), lambda: (0, 0)),
            pl.BlockSpec((NC, 1), lambda: (0, 0)),
        ],
        out_specs=pl.BlockSpec((NC, HW), lambda: (0, 0)),
        scratch_shapes=[
            pltpu.VMEM((NC, HW + 2 * PAD), jnp.float32),
            pltpu.VMEM((KH * KW * NC, HW), jnp.float32),
        ],
    )(x2, w_big, shift_col)
    return out.reshape(N, C, H, W)


def resnet_block_ref(x_nchw, w_oihw, b, gamma, beta, run_mean, run_var, eps=1e-5):
    # Pure-JAX reference (NCHW / OIHW) for correctness checking.
    y = lax.conv_general_dilated(
        x_nchw, w_oihw, window_strides=(1, 1), padding="SAME",
        dimension_numbers=("NCHW", "OIHW", "NCHW"))
    y = y + b.reshape(1, -1, 1, 1)
    scale = gamma / jnp.sqrt(run_var + eps)
    shift = beta - run_mean * scale
    y = y * scale.reshape(1, -1, 1, 1) + shift.reshape(1, -1, 1, 1)
    y = jnp.maximum(y, 0.0)
    return x_nchw + y


if __name__ == "__main__":
    # Module config: ResnetBlock(feat_dim=4) -> x is NCHW (2, 4, 16, 16).
    N, C, H, W = 2, 4, 16, 16

    key = jax.random.PRNGKey(0)
    kx, kw, kb, kg, kbe, km, kv = jax.random.split(key, 7)

    x_nchw = jax.random.normal(kx, (N, C, H, W), jnp.float32)

    # Conv2d(C, C, 3, 1, 1, bias=True) weights in PyTorch OIHW layout.
    w_oihw = 0.1 * jax.random.normal(kw, (C, C, KH, KW), jnp.float32)
    b = 0.1 * jax.random.normal(kb, (C,), jnp.float32)

    # BatchNorm2d(C) parameters / running stats (deterministic, non-trivial).
    gamma = 1.0 + 0.1 * jax.random.normal(kg, (C,), jnp.float32)
    beta = 0.1 * jax.random.normal(kbe, (C,), jnp.float32)
    run_mean = 0.1 * jax.random.normal(km, (C,), jnp.float32)
    run_var = 1.0 + 0.1 * jax.random.uniform(kv, (C,), jnp.float32)

    # One-time parameter packing (BN fold + im2col / block-diag layout), off the forward path.
    w_big, shift_col = prepare_resnet_block_params(
        w_oihw, b, gamma, beta, run_mean, run_var, batch=N)
    w_big, shift_col = jax.block_until_ready((w_big, shift_col))

    out = resnet_block_pallas(x_nchw, w_big, shift_col)
    out = jax.block_until_ready(out)

    ref = resnet_block_ref(x_nchw, w_oihw, b, gamma, beta, run_mean, run_var)
    assert out.shape == (N, C, H, W)
    assert jnp.allclose(out, ref, atol=1e-4, rtol=1e-4), "mismatch vs reference"

    print("KERNEL_OK")
</pallas_src>

<mosaic_0001>
module attributes {stable_mosaic.version = 11 : i64} {
  func.func @_resnet_block_kernel(%arg0: memref<8x256xf32, #tpu.memory_space<vmem>>, %arg1: memref<8x72xf32, #tpu.memory_space<vmem>>, %arg2: memref<8x1xf32, #tpu.memory_space<vmem>>, %arg3: memref<8x256xf32, #tpu.memory_space<vmem>>, %arg4: memref<8x512xf32, #tpu.memory_space<vmem>>, %arg5: memref<72x256xf32, #tpu.memory_space<vmem>>) attributes {dimension_semantics = [], scalar_prefetch = 0 : i64, scratch_operands = 2 : i64, tpu.core_type = #tpu.core_type<tc>} {
    %c0 = arith.constant 0 : index
    %c0_0 = arith.constant 0 : index
    %0 = vector.load %arg0[%c0, %c0_0] : memref<8x256xf32, #tpu.memory_space<vmem>>, vector<8x256xf32>
    %cst = arith.constant 0.000000e+00 : f32
    %1 = vector.broadcast %cst : f32 to vector<8x128xf32>
    %c0_1 = arith.constant 0 : index
    %c0_2 = arith.constant 0 : index
    %2 = vector.load %arg4[%c0_1, %c0_2] : memref<8x512xf32, #tpu.memory_space<vmem>>, vector<8x128xf32>
    tpu.vector_store %arg4[%c0_1, %c0_2], %1 {strides = array<i32>} : memref<8x512xf32, #tpu.memory_space<vmem>>, vector<8x128xf32>,
    %cst_3 = arith.constant 0.000000e+00 : f32
    %3 = vector.broadcast %cst_3 : f32 to vector<8x128xf32>
    %c0_4 = arith.constant 0 : index
    %c384 = arith.constant 384 : index
    %4 = vector.load %arg4[%c0_4, %c384] : memref<8x512xf32, #tpu.memory_space<vmem>>, vector<8x128xf32>
    tpu.vector_store %arg4[%c0_4, %c384], %3 {strides = array<i32>} : memref<8x512xf32, #tpu.memory_space<vmem>>, vector<8x128xf32>,
    %c0_5 = arith.constant 0 : index
    %c128 = arith.constant 128 : index
    %5 = vector.load %arg4[%c0_5, %c128] : memref<8x512xf32, #tpu.memory_space<vmem>>, vector<8x256xf32>
    tpu.vector_store %arg4[%c0_5, %c128], %0 {strides = array<i32>} : memref<8x512xf32, #tpu.memory_space<vmem>>, vector<8x256xf32>,
    %6 = tpu.iota {dimensions = array<i32: 1>} : vector<8x256xi32>
    %c16_i32 = arith.constant 16 : i32
    %c0_i32 = arith.constant 0 : i32
    %7 = arith.cmpi eq, %c16_i32, %c0_i32 : i32
    %c1_i32 = arith.constant 1 : i32
    %8 = arith.select %7, %c1_i32, %c16_i32 : i32
    %9 = vector.broadcast %8 : i32 to vector<8x256xi32>
    %10 = arith.remsi %6, %9 : vector<8x256xi32>
    %c0_i32_6 = arith.constant 0 : i32
    %11 = vector.broadcast %c0_i32_6 : i32 to vector<8x256xi32>
    %12 = arith.cmpi ne, %10, %11 : vector<8x256xi32>
    %c0_i32_7 = arith.constant 0 : i32
    %13 = vector.broadcast %c0_i32_7 : i32 to vector<8x256xi32>
    %14 = arith.cmpi slt, %10, %13 : vector<8x256xi32>
    %c0_i32_8 = arith.constant 0 : i32
    %15 = arith.cmpi slt, %8, %c0_i32_8 : i32
    %16 = vector.broadcast %15 : i1 to vector<8x256xi1>
    %17 = vector.broadcast %16 : vector<8x256xi1> to vector<8x256xi1>
    %18 = arith.xori %14, %17 : vector<8x256xi1>
    %19 = arith.andi %18, %12 : vector<8x256xi1>
    %20 = vector.broadcast %8 : i32 to vector<8x256xi32>
    %21 = arith.addi %10, %20 : vector<8x256xi32>
    %22 = arith.select %19, %21, %10 : vector<8x256xi1>, vector<8x256xi32>
    %c0_i32_9 = arith.constant 0 : i32
    %23 = vector.broadcast %c0_i32_9 : i32 to vector<8x256xi32>
    %24 = arith.cmpi sgt, %22, %23 : vector<8x256xi32>
    %c15_i32 = arith.constant 15 : i32
    %25 = vector.broadcast %c15_i32 : i32 to vector<8x256xi32>
    %26 = arith.cmpi slt, %22, %25 : vector<8x256xi32>
    %c0_10 = arith.constant 0 : index
    %c111 = arith.constant 111 : index
    %27 = vector.load %arg4[%c0_10, %c111] : memref<8x512xf32, #tpu.memory_space<vmem>>, vector<8x256xf32>
    %cst_11 = arith.constant 0.000000e+00 : f32
    %28 = vector.broadcast %cst_11 : f32 to vector<8x256xf32>
    %29 = arith.select %24, %27, %28 : vector<8x256xi1>, vector<8x256xf32>
    %c0_12 = arith.constant 0 : index
    %c0_13 = arith.constant 0 : index
    %30 = vector.load %arg5[%c0_12, %c0_13] : memref<72x256xf32, #tpu.memory_space<vmem>>, vector<8x256xf32>
    tpu.vector_store %arg5[%c0_12, %c0_13], %29 {strides = array<i32>} : memref<72x256xf32, #tpu.memory_space<vmem>>, vector<8x256xf32>,
    %c0_14 = arith.constant 0 : index
    %c112 = arith.constant 112 : index
    %31 = vector.load %arg4[%c0_14, %c112] : memref<8x512xf32, #tpu.memory_space<vmem>>, vector<8x256xf32>
    %c8 = arith.constant 8 : index
    %c0_15 = arith.constant 0 : index
    %32 = vector.load %arg5[%c8, %c0_15] : memref<72x256xf32, #tpu.memory_space<vmem>>, vector<8x256xf32>
    tpu.vector_store %arg5[%c8, %c0_15], %31 {strides = array<i32>} : memref<72x256xf32, #tpu.memory_space<vmem>>, vector<8x256xf32>,
    %c0_16 = arith.constant 0 : index
    %c113 = arith.constant 113 : index
    %33 = vector.load %arg4[%c0_16, %c113] : memref<8x512xf32, #tpu.memory_space<vmem>>, vector<8x256xf32>
    %cst_17 = arith.constant 0.000000e+00 : f32
    %34 = vector.broadcast %cst_17 : f32 to vector<8x256xf32>
    %35 = arith.select %26, %33, %34 : vector<8x256xi1>, vector<8x256xf32>
    %c16 = arith.constant 16 : index
    %c0_18 = arith.constant 0 : index
    %36 = vector.load %arg5[%c16, %c0_18] : memref<72x256xf32, #tpu.memory_space<vmem>>, vector<8x256xf32>
    tpu.vector_store %arg5[%c16, %c0_18], %35 {strides = array<i32>} : memref<72x256xf32, #tpu.memory_space<vmem>>, vector<8x256xf32>,
    %c0_19 = arith.constant 0 : index
    %c127 = arith.constant 127 : index
    %37 = vector.load %arg4[%c0_19, %c127] : memref<8x512xf32, #tpu.memory_space<vmem>>, vector<8x256xf32>
    %cst_20 = arith.constant 0.000000e+00 : f32
    %38 = vector.broadcast %cst_20 : f32 to vector<8x256xf32>
    %39 = arith.select %24, %37, %38 : vector<8x256xi1>, vector<8x256xf32>
    %c24 = arith.constant 24 : index
    %c0_21 = arith.constant 0 : index
    %40 = vector.load %arg5[%c24, %c0_21] : memref<72x256xf32, #tpu.memory_space<vmem>>, vector<8x256xf32>
    tpu.vector_store %arg5[%c24, %c0_21], %39 {strides = array<i32>} : memref<72x256xf32, #tpu.memory_space<vmem>>, vector<8x256xf32>,
    %c0_22 = arith.constant 0 : index
    %c128_23 = arith.constant 128 : index
    %41 = vector.load %arg4[%c0_22, %c128_23] : memref<8x512xf32, #tpu.memory_space<vmem>>, vector<8x256xf32>
    %c32 = arith.constant 32 : index
    %c0_24 = arith.constant 0 : index
    %42 = vector.load %arg5[%c32, %c0_24] : memref<72x256xf32, #tpu.memory_space<vmem>>, vector<8x256xf32>
    tpu.vector_store %arg5[%c32, %c0_24], %41 {strides = array<i32>} : memref<72x256xf32, #tpu.memory_space<vmem>>, vector<8x256xf32>,
    %c0_25 = arith.constant 0 : index
    %c129 = arith.constant 129 : index
    %43 = vector.load %arg4[%c0_25, %c129] : memref<8x512xf32, #tpu.memory_space<vmem>>, vector<8x256xf32>
    %cst_26 = arith.constant 0.000000e+00 : f32
    %44 = vector.broadcast %cst_26 : f32 to vector<8x256xf32>
    %45 = arith.select %26, %43, %44 : vector<8x256xi1>, vector<8x256xf32>
    %c40 = arith.constant 40 : index
    %c0_27 = arith.constant 0 : index
    %46 = vector.load %arg5[%c40, %c0_27] : memref<72x256xf32, #tpu.memory_space<vmem>>, vector<8x256xf32>
    tpu.vector_store %arg5[%c40, %c0_27], %45 {strides = array<i32>} : memref<72x256xf32, #tpu.memory_space<vmem>>, vector<8x256xf32>,
    %c0_28 = arith.constant 0 : index
    %c143 = arith.constant 143 : index
    %47 = vector.load %arg4[%c0_28, %c143] : memref<8x512xf32, #tpu.memory_space<vmem>>, vector<8x256xf32>
    %cst_29 = arith.constant 0.000000e+00 : f32
    %48 = vector.broadcast %cst_29 : f32 to vector<8x256xf32>
    %49 = arith.select %24, %47, %48 : vector<8x256xi1>, vector<8x256xf32>
    %c48 = arith.constant 48 : index
    %c0_30 = arith.constant 0 : index
    %50 = vector.load %arg5[%c48, %c0_30] : memref<72x256xf32, #tpu.memory_space<vmem>>, vector<8x256xf32>
    tpu.vector_store %arg5[%c48, %c0_30], %49 {strides = array<i32>} : memref<72x256xf32, #tpu.memory_space<vmem>>, vector<8x256xf32>,
    %c0_31 = arith.constant 0 : index
    %c144 = arith.constant 144 : index
    %51 = vector.load %arg4[%c0_31, %c144] : memref<8x512xf32, #tpu.memory_space<vmem>>, vector<8x256xf32>
    %c56 = arith.constant 56 : index
    %c0_32 = arith.constant 0 : index
    %52 = vector.load %arg5[%c56, %c0_32] : memref<72x256xf32, #tpu.memory_space<vmem>>, vector<8x256xf32>
    tpu.vector_store %arg5[%c56, %c0_32], %51 {strides = array<i32>} : memref<72x256xf32, #tpu.memory_space<vmem>>, vector<8x256xf32>,
    %c0_33 = arith.constant 0 : index
    %c145 = arith.constant 145 : index
    %53 = vector.load %arg4[%c0_33, %c145] : memref<8x512xf32, #tpu.memory_space<vmem>>, vector<8x256xf32>
    %cst_34 = arith.constant 0.000000e+00 : f32
    %54 = vector.broadcast %cst_34 : f32 to vector<8x256xf32>
    %55 = arith.select %26, %53, %54 : vector<8x256xi1>, vector<8x256xf32>
    %c64 = arith.constant 64 : index
    %c0_35 = arith.constant 0 : index
    %56 = vector.load %arg5[%c64, %c0_35] : memref<72x256xf32, #tpu.memory_space<vmem>>, vector<8x256xf32>
    tpu.vector_store %arg5[%c64, %c0_35], %55 {strides = array<i32>} : memref<72x256xf32, #tpu.memory_space<vmem>>, vector<8x256xf32>,
    %c0_36 = arith.constant 0 : index
    %c0_37 = arith.constant 0 : index
    %57 = vector.load %arg1[%c0_36, %c0_37] : memref<8x72xf32, #tpu.memory_space<vmem>>, vector<8x72xf32>
    %c0_38 = arith.constant 0 : index
    %c0_39 = arith.constant 0 : index
    %58 = vector.load %arg5[%c0_38, %c0_39] : memref<72x256xf32, #tpu.memory_space<vmem>>, vector<72x256xf32>
    %cst_40 = arith.constant dense<0.000000e+00> : vector<8x256xf32>
    %59 = tpu.matmul %57, %58, %cst_40 {dimension_numbers = #tpu.dot_dimension_numbers<[1], [0], [0], [1], [0, 0, 1, 1], [], []>} : vector<8x72xf32>, vector<72x256xf32>, vector<8x256xf32> -> vector<8x256xf32>
    %c0_41 = arith.constant 0 : index
    %c0_42 = arith.constant 0 : index
    %60 = vector.load %arg2[%c0_41, %c0_42] : memref<8x1xf32, #tpu.memory_space<vmem>>, vector<8x1xf32>
    %61 = vector.broadcast %60 : vector<8x1xf32> to vector<8x256xf32>
    %62 = arith.addf %59, %61 : vector<8x256xf32>
    %cst_43 = arith.constant 0.000000e+00 : f32
    %63 = vector.broadcast %cst_43 : f32 to vector<8x256xf32>
    %64 = arith.maximumf %62, %63 : vector<8x256xf32>
    %65 = arith.addf %0, %64 : vector<8x256xf32>
    %c0_44 = arith.constant 0 : index
    %c0_45 = arith.constant 0 : index
    %66 = vector.load %arg3[%c0_44, %c0_45] : memref<8x256xf32, #tpu.memory_space<vmem>>, vector<8x256xf32>
    tpu.vector_store %arg3[%c0_44, %c0_45], %65 {strides = array<i32>} : memref<8x256xf32, #tpu.memory_space<vmem>>, vector<8x256xf32>,
    return
  }
}

</mosaic_0001>

<llo_original>
// kernel: tpu_custom_call.1
$region0: #{tpu_custom_call.1}
  #allocation0 [shape = 'u32[]', space=smem, size = 0x4, offset = 0x4, fixed_abs, tag = 'smem constant byte address 0x4 - core index']
  #allocation1 [shape = 'u32[72,128]{1,0:T(1,128)}', space=vmem, size = 0x9000, scoped, tag = 'internal scratch']
  #allocation2 [shape = 'f32[8,512]{1,0:T(8,128)}', space=vmem, size = 0x4000, scoped, tag = 'scratch operand']
  #allocation3 [shape = 'f32[72,256]{1,0:T(8,128)}', space=vmem, size = 0x12000, scoped, tag = 'scratch operand']
  %s0 = inlined_call_operand.hbm [shape: f32[8,256], index: 0, kind: input, shape index: {}]
  %s1 = inlined_call_operand.vmem [shape: f32[8,72], index: 1, kind: input, shape index: {}]
  %s2 = inlined_call_operand.vmem [shape: f32[8,1], index: 2, kind: input, shape index: {}]
  %s3 = inlined_call_operand.hbm [shape: f32[8,256], index: 3, kind: output, shape index: {}]
  %s4 = sld [smem:[#allocation0]]
  $region26: #{tpu_custom_call.1} parent=0
    _
  %s6 = ssub.s32 1, %s4
  %s7 = scalar_select 0, %s6, %s4
  $region1: #{tpu_custom_call.1} parent=0
    #allocation4 [shape = 'u8[8192]{0}', space=vmem, size = 0x2000, scoped, tag = 'input window, operand 0, single buffered']
    #allocation5 [shape = 's32[1]{0}', space=sflag, size = 0x4, scoped, tag = 'scoped memory for tpu_custom_call.1']
    #allocation6 [shape = 's32[1]{0}', space=sflag, size = 0x4, scoped, tag = 'scoped memory for tpu_custom_call.1']
    #allocation7 [shape = 'u8[8192]{0}', space=vmem, size = 0x2000, scoped, tag = 'output window, operand 0, single buffered']
    %8 = vsyncpa [#allocation5], 0
    %9 = vsyncpa [#allocation6], 0
    // Predicated region
    $region2: #{tpu_custom_call.1} parent=1 // pred_check
      _
    $region3: #{tpu_custom_call.1} parent=1 // pred_check_branch
      %11 = sbr.rel (0) target = $region5
    $region4: #{tpu_custom_call.1} parent=1 // pred_region
      %13 = vsyncadd [#allocation5], 0
      %s15 = sshll.u32 %s0, 4
      %s16 = int_to_ptr.hbm [resolvable:$true] %s15
      %s17 = sshll.u32 [#allocation4], 4
      %s18 = int_to_ptr.vmem [resolvable:$true] %s17
      %20 = dma.hbm_to_vmem [thread:$0]  %s16, 256, %s18, [#allocation5]
    $region5: #{tpu_custom_call.1} parent=1 // pred_fallthru
      _
    // Predicated region
    $region6: #{tpu_custom_call.1} parent=1 // pred_check
      _
    $region7: #{tpu_custom_call.1} parent=1 // pred_check_branch
      %22 = sbr.rel (0) target = $region9
    $region8: #{tpu_custom_call.1} parent=1 // pred_region
      _
    $region9: #{tpu_custom_call.1} parent=1 // pred_fallthru
      _
    // Predicated region
    $region10: #{tpu_custom_call.1} parent=1 // pred_check
      _
    $region11: #{tpu_custom_call.1} parent=1 // pred_check_branch
      %24 = sbr.rel (0) target = $region13
    $region12: #{tpu_custom_call.1} parent=1 // pred_region
      _
    $region13: #{tpu_custom_call.1} parent=1 // pred_fallthru
      _
    // Predicated region
    $region14: #{tpu_custom_call.1} parent=1 // pred_check
      _
    $region15: #{tpu_custom_call.1} parent=1 // pred_check_branch
      %26 = sbr.rel (0) target = $region17
    $region16: #{tpu_custom_call.1} parent=1 // pred_region
      %28 = dma.done [#allocation5], 256
    $region17: #{tpu_custom_call.1} parent=1 // pred_fallthru
      _
    %v29 = vld [vmem:[#allocation4] sm:$0xff]
    %v30 = vld [vmem:[#allocation4 + $0x8] sm:$0xff]
    %31 = vst [vmem:[#allocation2] sm:$0xff] 0.0
    %32 = vst [vmem:[#allocation2 + $0x18] sm:$0xff] 0.0
    %33 = vst [vmem:[#allocation2 + $0x8] sm:$0xff] %v29
    %34 = vst [vmem:[#allocation2 + $0x10] sm:$0xff] %v30
    %v35 = vlaneseq
    %v36 = vand.u32 %v35, 127
    %v37 = vadd.s32 %v36, 128
    %vm38 = vcmp.lt.s32.totalorder %v36, 0
    %v39 = vsub.s32 0, %v36
    %v40 = vsel %vm38, %v39, %v36
    %v41 = vshrl.u32 %v40, 4
    %v42 = vand.u32 %v40, 15
    %v43 = vsub.s32 0, %v42
    %v44 = vsel %vm38, %v43, %v42
    %vm45 = vcmp.lt.s32.totalorder %v37, 0
    %v46 = vsub.s32 0, %v37
    %v47 = vsel %vm45, %v46, %v37
    %v48 = vshrl.u32 %v47, 4
    %v49 = vand.u32 %v47, 15
    %v50 = vsub.s32 0, %v49
    %v51 = vsel %vm45, %v50, %v49
    %vm52 = vcmp.ne.s32.totalorder %v44, 0
    %vm53 = vcmp.ne.s32.totalorder %v51, 0
    %vm54 = vcmp.lt.s32.totalorder %v44, 0
    %vm55 = vcmp.lt.s32.totalorder %v51, 0
    %vm56 = vmand %vm54, %vm52
    %vm57 = vmand %vm55, %vm53
    %v58 = vadd.s32 %v44, 16
    %v59 = vadd.s32 %v51, 16
    %v60 = vsel %vm56, %v58, %v44
    %v61 = vsel %vm57, %v59, %v51
    %vm62 = vcmp.gt.s32.totalorder %v60, 0
    %vm63 = vcmp.gt.s32.totalorder %v61, 0
    %vm64 = vcmp.lt.s32.totalorder %v60, 15
    %vm65 = vcmp.lt.s32.totalorder %v61, 15
    %v66 = vld [vmem:[#allocation2] sm:$0xff]
    %v67 = vld [vmem:[#allocation2 + $0x8] sm:$0xff]
    %v68 = vld [vmem:[#allocation2 + $0x10] sm:$0xff]
    %72 = vrot.lane.b32.xlu0 %v66, 17
    %v73 = vpop.permute.xlu0 %72
    %74 = vrot.lane.b32.xlu0 %v67, 17
    %v75 = vpop.permute.xlu0 %74
    %76 = vrot.lane.b32.xlu0 %v68, 17
    %v77 = vpop.permute.xlu0 %76
    %vm78 = vcmask 138240
    %v79 = vsel %vm78, %v73, %v75
    %v80 = vsel %vm78, %v75, %v77
    %v83 = vsel %vm62, %v79, 0.0
    %v84 = vsel %vm63, %v80, 0.0
    %85 = vst [vmem:[#allocation3] sm:$0xff] %v83
    %86 = vst [vmem:[#allocation3 + $0x8] sm:$0xff] %v84
    %v87 = vld [vmem:[#allocation2] sm:$0xff]
    %v88 = vld [vmem:[#allocation2 + $0x8] sm:$0xff]
    %v89 = vld [vmem:[#allocation2 + $0x10] sm:$0xff]
    %93 = vrot.lane.b32.xlu0 %v87, 16
    %v94 = vpop.permute.xlu0 %93
    %95 = vrot.lane.b32.xlu0 %v88, 16
    %v96 = vpop.permute.xlu0 %95
    %97 = vrot.lane.b32.xlu0 %v89, 16
    %v98 = vpop.permute.xlu0 %97
    %vm99 = vcmask 130048
    %v100 = vsel %vm99, %v94, %v96
    %v101 = vsel %vm99, %v96, %v98
    %104 = vst [vmem:[#allocation3 + $0x10] sm:$0xff] %v100
    %105 = vst [vmem:[#allocation3 + $0x18] sm:$0xff] %v101
    %v106 = vld [vmem:[#allocation2] sm:$0xff]
    %v107 = vld [vmem:[#allocation2 + $0x8] sm:$0xff]
    %v108 = vld [vmem:[#allocation2 + $0x10] sm:$0xff]
    %112 = vrot.lane.b32.xlu0 %v106, 15
    %v113 = vpop.permute.xlu0 %112
    %114 = vrot.lane.b32.xlu0 %v107, 15
    %v115 = vpop.permute.xlu0 %114
    %116 = vrot.lane.b32.xlu0 %v108, 15
    %v117 = vpop.permute.xlu0 %116
    %vm118 = vcmask 121856
    %v119 = vsel %vm118, %v113, %v115
    %v120 = vsel %vm118, %v115, %v117
    %v123 = vsel %vm64, %v119, 0.0
    %v124 = vsel %vm65, %v120, 0.0
    %125 = vst [vmem:[#allocation3 + $0x20] sm:$0xff] %v123
    %126 = vst [vmem:[#allocation3 + $0x28] sm:$0xff] %v124
    %v127 = vld [vmem:[#allocation2] sm:$0xff]
    %v128 = vld [vmem:[#allocation2 + $0x8] sm:$0xff]
    %v129 = vld [vmem:[#allocation2 + $0x10] sm:$0xff]
    %133 = vrot.lane.b32.xlu0 %v127, 1
    %v134 = vpop.permute.xlu0 %133
    %135 = vrot.lane.b32.xlu0 %v128, 1
    %v136 = vpop.permute.xlu0 %135
    %137 = vrot.lane.b32.xlu0 %v129, 1
    %v138 = vpop.permute.xlu0 %137
    %vm139 = vcmask 7168
    %v140 = vsel %vm139, %v134, %v136
    %v141 = vsel %vm139, %v136, %v138
    %v144 = vsel %vm62, %v140, 0.0
    %v145 = vsel %vm63, %v141, 0.0
    %146 = vst [vmem:[#allocation3 + $0x30] sm:$0xff] %v144
    %147 = vst [vmem:[#allocation3 + $0x38] sm:$0xff] %v145
    %v148 = vld [vmem:[#allocation2 + $0x8] sm:$0xff]
    %v149 = vld [vmem:[#allocation2 + $0x10] sm:$0xff]
    %150 = vst [vmem:[#allocation3 + $0x40] sm:$0xff] %v148
    %151 = vst [vmem:[#allocation3 + $0x48] sm:$0xff] %v149
    %v152 = vld [vmem:[#allocation2 + $0x8] sm:$0xff]
    %v153 = vld [vmem:[#allocation2 + $0x10] sm:$0xff]
    %v154 = vld [vmem:[#allocation2 + $0x18] sm:$0xff]
    %158 = vrot.lane.b32.xlu0 %v152, 127
    %v159 = vpop.permute.xlu0 %158
    %160 = vrot.lane.b32.xlu0 %v153, 127
    %v161 = vpop.permute.xlu0 %160
    %162 = vrot.lane.b32.xlu0 %v154, 127
    %v163 = vpop.permute.xlu0 %162
    %vm164 = vcmask 1039360
    %v165 = vsel %vm164, %v159, %v161
    %v166 = vsel %vm164, %v161, %v163
    %v169 = vsel %vm64, %v165, 0.0
    %v170 = vsel %vm65, %v166, 0.0
    %171 = vst [vmem:[#allocation3 + $0x50] sm:$0xff] %v169
    %172 = vst [vmem:[#allocation3 + $0x58] sm:$0xff] %v170
    %v173 = vld [vmem:[#allocation2 + $0x8] sm:$0xff]
    %v174 = vld [vmem:[#allocation2 + $0x10] sm:$0xff]
    %v175 = vld [vmem:[#allocation2 + $0x18] sm:$0xff]
    %179 = vrot.lane.b32.xlu0 %v173, 113
    %v180 = vpop.permute.xlu0 %179
    %181 = vrot.lane.b32.xlu0 %v174, 113
    %v182 = vpop.permute.xlu0 %181
    %183 = vrot.lane.b32.xlu0 %v175, 113
    %v184 = vpop.permute.xlu0 %183
    %vm185 = vcmask 924672
    %v186 = vsel %vm185, %v180, %v182
    %v187 = vsel %vm185, %v182, %v184
    %v190 = vsel %vm62, %v186, 0.0
    %v191 = vsel %vm63, %v187, 0.0
    %192 = vst [vmem:[#allocation3 + $0x60] sm:$0xff] %v190
    %193 = vst [vmem:[#allocation3 + $0x68] sm:$0xff] %v191
    %v194 = vld [vmem:[#allocation2 + $0x8] sm:$0xff]
    %v195 = vld [vmem:[#allocation2 + $0x10] sm:$0xff]
    %v196 = vld [vmem:[#allocation2 + $0x18] sm:$0xff]
    %200 = vrot.lane.b32.xlu0 %v194, 112
    %v201 = vpop.permute.xlu0 %200
    %202 = vrot.lane.b32.xlu0 %v195, 112
    %v203 = vpop.permute.xlu0 %202
    %204 = vrot.lane.b32.xlu0 %v196, 112
    %v205 = vpop.permute.xlu0 %204
    %vm206 = vcmask 916480
    %v207 = vsel %vm206, %v201, %v203
    %v208 = vsel %vm206, %v203, %v205
    %211 = vst [vmem:[#allocation3 + $0x70] sm:$0xff] %v207
    %212 = vst [vmem:[#allocation3 + $0x78] sm:$0xff] %v208
    %v213 = vld [vmem:[#allocation2 + $0x8] sm:$0xff]
    %v214 = vld [vmem:[#allocation2 + $0x10] sm:$0xff]
    %v215 = vld [vmem:[#allocation2 + $0x18] sm:$0xff]
    %219 = vrot.lane.b32.xlu0 %v213, 111
    %v220 = vpop.permute.xlu0 %219
    %221 = vrot.lane.b32.xlu0 %v214, 111
    %v222 = vpop.permute.xlu0 %221
    %223 = vrot.lane.b32.xlu0 %v215, 111
    %v224 = vpop.permute.xlu0 %223
    %vm225 = vcmask 908288
    %v226 = vsel %vm225, %v220, %v222
    %v227 = vsel %vm225, %v222, %v224
    %v230 = vsel %vm64, %v226, 0.0
    %v231 = vsel %vm65, %v227, 0.0
    %232 = vst [vmem:[#allocation3 + $0x80] sm:$0xff] %v230
    %233 = vst [vmem:[#allocation3 + $0x88] sm:$0xff] %v231
    %v234 = vld [vmem:[%s1] sm:$0xff]
    %v235 = vld [vmem:[#allocation3] sm:$0xff]
    %v236 = vld [vmem:[#allocation3 + $0x8] sm:$0xff]
    %v237 = vld [vmem:[#allocation3 + $0x10] sm:$0xff]
    %v238 = vld [vmem:[#allocation3 + $0x18] sm:$0xff]
    %v239 = vld [vmem:[#allocation3 + $0x20] sm:$0xff]
    %v240 = vld [vmem:[#allocation3 + $0x28] sm:$0xff]
    %v241 = vld [vmem:[#allocation3 + $0x30] sm:$0xff]
    %v242 = vld [vmem:[#allocation3 + $0x38] sm:$0xff]
    %v243 = vld [vmem:[#allocation3 + $0x40] sm:$0xff]
    %v244 = vld [vmem:[#allocation3 + $0x48] sm:$0xff]
    %v245 = vld [vmem:[#allocation3 + $0x50] sm:$0xff]
    %v246 = vld [vmem:[#allocation3 + $0x58] sm:$0xff]
    %v247 = vld [vmem:[#allocation3 + $0x60] sm:$0xff]
    %v248 = vld [vmem:[#allocation3 + $0x68] sm:$0xff]
    %v249 = vld [vmem:[#allocation3 + $0x70] sm:$0xff]
    %v250 = vld [vmem:[#allocation3 + $0x78] sm:$0xff]
    %v251 = vld [vmem:[#allocation3 + $0x80] sm:$0xff]
    %v252 = vld [vmem:[#allocation3 + $0x88] sm:$0xff]
    %v253 = vld [vmem:[%s2] sm:$0xff]
    %255 = vset.pattern.permute.xlu0 0
    %256 = vperm.xlu0 %255, %v253
    %v257 = vpop.permute.xlu0 %256
    %vm259 = vcmask 588800
    %v261 = vsel %vm259, %v234, 0
    %263 = vmatpush.msra.mxu0 0.0
    %264 = vmatpush.msra.mxu0 0.0
    %265 = vmatpush.msra.mxu0 0.0
    %266 = vmatpush.msra.mxu0 0.0
    %267 = vmatpush.msra.mxu0 0.0
    %268 = vmatpush.msra.mxu0 0.0
    %269 = vmatpush.msra.mxu0 0.0
    %270 = vmatpush.msra.mxu0 %v251
    %271 = vmatpush.msra.mxu0 %v249
    %272 = vmatpush.msra.mxu0 %v247
    %273 = vmatpush.msra.mxu0 %v245
    %274 = vmatpush.msra.mxu0 %v243
    %275 = vmatpush.msra.mxu0 %v241
    %276 = vmatpush.msra.mxu0 %v239
    %277 = vmatpush.msra.mxu0 %v237
    %278 = vmatpush.msra.mxu0 %v235
    %279 = vmatmul.f32.gmra.mxu0 %v261
    %v280 = vpop.f32.mrf.mxu0
    %v281 = vadd.f32 %v257, %v280
    %282 = vdwg.mxu0
    %283 = vmatpush.msra.mxu0 0.0
    %284 = vmatpush.msra.mxu0 0.0
    %285 = vmatpush.msra.mxu0 0.0
    %286 = vmatpush.msra.mxu0 0.0
    %287 = vmatpush.msra.mxu0 0.0
    %288 = vmatpush.msra.mxu0 0.0
    %289 = vmatpush.msra.mxu0 0.0
    %290 = vmatpush.msra.mxu0 %v252
    %291 = vmatpush.msra.mxu0 %v250
    %292 = vmatpush.msra.mxu0 %v248
    %293 = vmatpush.msra.mxu0 %v246
    %294 = vmatpush.msra.mxu0 %v244
    %295 = vmatpush.msra.mxu0 %v242
    %296 = vmatpush.msra.mxu0 %v240
    %297 = vmatpush.msra.mxu0 %v238
    %298 = vmatpush.msra.mxu0 %v236
    %299 = vmatmul.f32.gmra.mxu0 %v261
    %v300 = vpop.f32.mrf.mxu0
    %v301 = vadd.f32 %v257, %v300
    %302 = vdwg.mxu0
    %v303 = vmax.f32 %v281, 0.0
    %v304 = vmax.f32 %v301, 0.0
    %v305 = vadd.f32 %v29, %v303
    %v306 = vadd.f32 %v30, %v304
    %307 = vst [vmem:[#allocation7] sm:$0xff] %v305
    %308 = vst [vmem:[#allocation7 + $0x8] sm:$0xff] %v306
    // Predicated region
    $region18: #{tpu_custom_call.1} parent=1 // pred_check
      _
    $region19: #{tpu_custom_call.1} parent=1 // pred_check_branch
      %310 = sbr.rel (0) target = $region21
    $region20: #{tpu_custom_call.1} parent=1 // pred_region
      %312 = vsyncadd [#allocation6], 0
      %s314 = sshll.u32 [#allocation7], 4
      %s315 = int_to_ptr.vmem [resolvable:$true] %s314
      %s316 = sshll.u32 %s3, 4
      %s317 = int_to_ptr.hbm [resolvable:$true] %s316
      %319 = dma.vmem_to_hbm [thread:$0]  %s315, 256, %s317, [#allocation6]
    $region21: #{tpu_custom_call.1} parent=1 // pred_fallthru
      _
    // Predicated region
    $region22: #{tpu_custom_call.1} parent=1 // pred_check
      _
    $region23: #{tpu_custom_call.1} parent=1 // pred_check_branch
      %321 = sbr.rel (0) target = $region25
    $region24: #{tpu_custom_call.1} parent=1 // pred_region
      %323 = dma.done [#allocation6], 256
    $region25: #{tpu_custom_call.1} parent=1 // pred_fallthru
      _
    %324 = vsyncpa [#allocation5], 1
    %325 = vsyncpa [#allocation6], 1

</llo_original>
